<compile_context>
chip_gen: v7x
topology: tpu7x:2x2x1
jax: 0.10.0
libtpu: 0.0.40
codegen_flags: <defaults>
</compile_context>

<pallas_src>
import functools
import math

import jax
import jax.numpy as jnp
from jax import lax
from jax.experimental import pallas as pl
from jax.experimental.pallas import tpu as pltpu


def _round_up(x, m):
    return (x + m - 1) // m * m


# --------------------------------------------------------------------------
# Pallas kernel: fused box-head MLP
#   fc6 + ReLU -> fc7 + ReLU -> fused (cls | bbox) head -> softmax over classes
# --------------------------------------------------------------------------
def _roi_head_mlp_kernel(x_ref, w6_ref, b6_ref, w7_ref, b7_ref,
                         wh_ref, bh_ref, head_ref, prob_ref, *, num_classes):
    x = x_ref[...]                                                   # (TN, IDP) bf16

    # fc6 + ReLU (bf16 MXU, f32 accumulate / elementwise)
    h6 = jnp.dot(x, w6_ref[...], preferred_element_type=jnp.float32) + b6_ref[...]
    h6 = jnp.maximum(h6, 0.0)

    # fc7 + ReLU
    h7 = jnp.dot(h6.astype(jnp.bfloat16), w7_ref[...],
                 preferred_element_type=jnp.float32) + b7_ref[...]
    h7 = jnp.maximum(h7, 0.0)

    # fused classification + bbox-regression head (lane-dense padded output)
    fused = jnp.dot(h7.astype(jnp.bfloat16), wh_ref[...],
                    preferred_element_type=jnp.float32) + bh_ref[...]  # (TN, HP)
    head_ref[...] = fused

    # softmax over the first `num_classes` columns (eval path)
    kp = prob_ref.shape[-1]
    cls = fused[:, :kp]                                              # (TN, KP)
    col = lax.broadcasted_iota(jnp.int32, cls.shape, 1)
    logits = jnp.where(col < num_classes, cls, -jnp.inf)
    m = jnp.max(logits, axis=-1, keepdims=True)
    e = jnp.exp(logits - m)                                          # pad cols -> 0
    denom = jnp.sum(e, axis=-1, keepdims=True)
    prob_ref[...] = e * pl.reciprocal(denom, approx=True)


def roi_head_mlp(pooled_flat, params, num_classes):
    """pooled_flat: (N, C*P*P) f32.

    Returns (cls_scores (N, K), box_transform_pred (N, K, 4), probs (N, K))."""
    n, in_dim = pooled_flat.shape
    k = num_classes

    in_dim_p = params["w6"].shape[0]
    dp = params["w6"].shape[1]
    hp = params["wh"].shape[1]
    kp = _round_up(k, 128)

    # Tile over ROIs: up to 128 rows per grid step, N padded to the tile size.
    tn = min(128, _round_up(max(n, 1), 8))
    n_pad = _round_up(n, tn)
    grid = (n_pad // tn,)

    # Pad activations to the tiled/padded shape; zero pad rows/cols contribute 0.
    x = jnp.pad(pooled_flat, ((0, n_pad - n), (0, in_dim_p - in_dim)))
    x = x.astype(jnp.bfloat16)

    # Rough cost estimate (helps XLA schedule surrounding glue around the kernel).
    flops = 2 * n_pad * (in_dim_p * dp + dp * dp + dp * hp)
    bytes_accessed = (
        x.size * 2
        + (in_dim_p * dp + dp * dp + dp * hp) * 2        # bf16 weights
        + (2 * dp + hp) * 4                              # f32 biases
        + n_pad * (hp + kp) * 4)                         # f32 outputs
    cost = pl.CostEstimate(flops=flops, transcendentals=n_pad * kp,
                           bytes_accessed=bytes_accessed)

    # Scoped VMEM estimate (double-buffered activations, resident weights).
    vmem_bytes = (
        2 * tn * in_dim_p * 2                            # x (bf16, 2 buffers)
        + 2 * tn * (hp + kp) * 4                         # outputs (f32, 2 buffers)
        + 2 * ((in_dim_p * dp + dp * dp + dp * hp) * 2 + (2 * dp + hp) * 4)
        + 2 * tn * (2 * dp + hp + kp) * 4)               # intermediates headroom
    vmem_limit = int(min(max(vmem_bytes, 16 * 1024 * 1024), 64 * 1024 * 1024))

    # TODO(synk): once pl.Buffered(1) is validated on the target jax version, use it
    # on the invariant weight BlockSpecs to avoid double-buffering them on v7x.
    head_pad, prob_pad = pl.pallas_call(
        functools.partial(_roi_head_mlp_kernel, num_classes=k),
        out_shape=(
            jax.ShapeDtypeStruct((n_pad, hp), jnp.float32),   # fused cls|bbox (padded)
            jax.ShapeDtypeStruct((n_pad, kp), jnp.float32),   # softmax probs (padded)
        ),
        grid_spec=pltpu.PrefetchScalarGridSpec(
            num_scalar_prefetch=0,
            grid=grid,
            in_specs=[
                pl.BlockSpec((tn, in_dim_p), lambda i: (i, 0)),     # x tile
                pl.BlockSpec((in_dim_p, dp), lambda i: (0, 0)),     # w6 (resident)
                pl.BlockSpec((1, dp), lambda i: (0, 0)),            # b6
                pl.BlockSpec((dp, dp), lambda i: (0, 0)),           # w7
                pl.BlockSpec((1, dp), lambda i: (0, 0)),            # b7
                pl.BlockSpec((dp, hp), lambda i: (0, 0)),           # fused head W
                pl.BlockSpec((1, hp), lambda i: (0, 0)),            # fused head b
            ],
            out_specs=(
                pl.BlockSpec((tn, hp), lambda i: (i, 0)),
                pl.BlockSpec((tn, kp), lambda i: (i, 0)),
            ),
        ),
        compiler_params=pltpu.CompilerParams(
            dimension_semantics=("parallel",),
            vmem_limit_bytes=vmem_limit),
        cost_estimate=cost,
    )(x, params["w6"], params["b6"], params["w7"], params["b7"],
      params["wh"], params["bh"])

    cls_scores = head_pad[:n, :k]
    box_transform_pred = head_pad[:n, k:5 * k].reshape(n, k, 4)
    probs = prob_pad[:n, :k]
    return cls_scores, box_transform_pred, probs


# --------------------------------------------------------------------------
# Plain-JAX glue: ROI max-pooling (torchvision.ops.roi_pool semantics),
# separable two-stage masked max (no (C,P,P,H,W) broadcast).
# --------------------------------------------------------------------------
# TODO(synk): move roi_pool into a Pallas kernel (PrefetchScalarGridSpec with
# per-ROI bin boundaries in SMEM + manual DMA of the feature map from HBM).
def roi_pool(feat, rois, output_size, spatial_scale):
    """feat: (1, C, H, W) NCHW.  rois: (N, 4) [x1, y1, x2, y2] image coords."""
    _, C, H, W = feat.shape
    P = output_size
    fm = feat[0]                                                     # (C, H, W)

    def pool_one(roi):
        x1 = jnp.round(roi[0] * spatial_scale)
        y1 = jnp.round(roi[1] * spatial_scale)
        x2 = jnp.round(roi[2] * spatial_scale)
        y2 = jnp.round(roi[3] * spatial_scale)
        roi_w = jnp.maximum(x2 - x1 + 1.0, 1.0)
        roi_h = jnp.maximum(y2 - y1 + 1.0, 1.0)
        bin_h = roi_h / P
        bin_w = roi_w / P

        pidx = jnp.arange(P, dtype=jnp.float32)
        hstart = jnp.clip(jnp.floor(pidx * bin_h) + y1, 0.0, float(H))
        hend = jnp.clip(jnp.ceil((pidx + 1.0) * bin_h) + y1, 0.0, float(H))
        wstart = jnp.clip(jnp.floor(pidx * bin_w) + x1, 0.0, float(W))
        wend = jnp.clip(jnp.ceil((pidx + 1.0) * bin_w) + x1, 0.0, float(W))

        hh = jnp.arange(H, dtype=jnp.float32)
        ww = jnp.arange(W, dtype=jnp.float32)
        hmask = (hh[None, :] >= hstart[:, None]) & (hh[None, :] < hend[:, None])  # (P, H)
        wmask = (ww[None, :] >= wstart[:, None]) & (ww[None, :] < wend[:, None])  # (P, W)

        # stage 1: masked max over W  -> (C, H, P)
        vals_w = jnp.where(wmask[None, None, :, :], fm[:, :, None, :], -jnp.inf)
        red_w = jnp.max(vals_w, axis=-1)
        # stage 2: masked max over H  -> (C, P, P)
        vals_h = jnp.where(hmask[None, :, :, None], red_w[:, None, :, :], -jnp.inf)
        pooled = jnp.max(vals_h, axis=2)

        empty = (~jnp.any(hmask, axis=-1))[:, None] | (~jnp.any(wmask, axis=-1))[None, :]
        return jnp.where(empty[None], 0.0, pooled)

    return jax.vmap(pool_one)(rois)                                  # (N, C, P, P)


_BBOX_XFORM_CLIP = math.log(1000.0 / 16.0)


def apply_regression_to_anchors(box_transform_pred, anchors):
    """box_transform_pred: (N, K, 4); anchors: (N, 4) -> (N, K, 4)."""
    w = anchors[:, 2] - anchors[:, 0]
    h = anchors[:, 3] - anchors[:, 1]
    cx = anchors[:, 0] + 0.5 * w
    cy = anchors[:, 1] + 0.5 * h
    dx = box_transform_pred[..., 0]
    dy = box_transform_pred[..., 1]
    dw = jnp.minimum(box_transform_pred[..., 2], _BBOX_XFORM_CLIP)
    dh = jnp.minimum(box_transform_pred[..., 3], _BBOX_XFORM_CLIP)
    pcx = dx * w[:, None] + cx[:, None]
    pcy = dy * h[:, None] + cy[:, None]
    pw = jnp.exp(dw) * w[:, None]
    ph = jnp.exp(dh) * h[:, None]
    return jnp.stack(
        [pcx - 0.5 * pw, pcy - 0.5 * ph, pcx + 0.5 * pw, pcy + 0.5 * ph], axis=-1)


def clamp_boxes_to_img_boundary(boxes, image_shape):
    H, W = image_shape
    x1 = jnp.clip(boxes[..., 0], 0.0, float(W))
    y1 = jnp.clip(boxes[..., 1], 0.0, float(H))
    x2 = jnp.clip(boxes[..., 2], 0.0, float(W))
    y2 = jnp.clip(boxes[..., 3], 0.0, float(H))
    return jnp.stack([x1, y1, x2, y2], axis=-1)


# --------------------------------------------------------------------------
# ROIHead module (eval / inference path)
# --------------------------------------------------------------------------
class ROIHeadPallas:
    def __init__(self, model_config, num_classes, in_channels, key):
        self.num_classes = num_classes
        self.pool_size = model_config["roi_pool_size"]
        self.fc_inner_dim = model_config["fc_inner_dim"]
        self.low_score_threshold = model_config["roi_score_threshold"]
        self.nms_threshold = model_config["roi_nms_threshold"]
        self.topK_detections = model_config["roi_topk_detections"]

        in_dim = in_channels * self.pool_size * self.pool_size
        d = self.fc_inner_dim
        k = num_classes
        k6, k7, kc, kb, kb6, kb7 = jax.random.split(key, 6)

        def linear_init(kw, fan_in, fan_out, kbias):
            bound = 1.0 / math.sqrt(fan_in)
            w = jax.random.uniform(kw, (fan_in, fan_out), jnp.float32, -bound, bound)
            b = jax.random.uniform(kbias, (1, fan_out), jnp.float32, -bound, bound)
            return w, b

        w6, b6 = linear_init(k6, in_dim, d, kb6)
        w7, b7 = linear_init(k7, d, d, kb7)
        # cls / bbox heads: normal(std=0.01 / 0.001), zero bias (as in __init__)
        wc = 0.01 * jax.random.normal(kc, (d, k), jnp.float32)
        bc = jnp.zeros((1, k), jnp.float32)
        wb = 0.001 * jax.random.normal(kb, (d, 4 * k), jnp.float32)
        bb = jnp.zeros((1, 4 * k), jnp.float32)

        # ---- build padded, MXU-friendly kernel parameters ----
        in_dim_p = _round_up(in_dim, 128)
        dp = _round_up(d, 128)
        hp = _round_up(5 * k, 128)           # fused cls(K) | bbox(4K) output width

        def pad2(a, rows, cols):
            return jnp.pad(a, ((0, rows - a.shape[0]), (0, cols - a.shape[1])))

        wh = jnp.concatenate([wc, wb], axis=1)     # (d, 5K)
        bh = jnp.concatenate([bc, bb], axis=1)     # (1, 5K)

        self.kernel_params = dict(
            w6=pad2(w6, in_dim_p, dp).astype(jnp.bfloat16),
            b6=pad2(b6, 1, dp),
            w7=pad2(w7, dp, dp).astype(jnp.bfloat16),
            b7=pad2(b7, 1, dp),
            wh=pad2(wh, dp, hp).astype(jnp.bfloat16),
            bh=pad2(bh, 1, hp),
        )

    def __call__(self, feat, proposals, image_shape):
        # spatial scale = 2 ** round(log2(feat_spatial / image_spatial))
        approx_scale = float(feat.shape[-2]) / float(image_shape[0])
        spatial_scale = 2.0 ** round(math.log2(approx_scale))

        pooled = roi_pool(feat, proposals, self.pool_size, spatial_scale)  # (N, C, P, P)
        pooled_flat = pooled.reshape(pooled.shape[0], -1)                  # (N, C*P*P)

        cls_scores, box_transform_pred, pred_scores = roi_head_mlp(
            pooled_flat, self.kernel_params, self.num_classes)
        num_boxes, num_classes = cls_scores.shape

        pred_boxes = apply_regression_to_anchors(box_transform_pred, proposals)
        pred_boxes = clamp_boxes_to_img_boundary(pred_boxes, image_shape)
        pred_labels = jnp.broadcast_to(jnp.arange(num_classes)[None, :], pred_scores.shape)

        # drop background class (index 0) and flatten, as in the torch code
        pred_boxes = pred_boxes[:, 1:].reshape(-1, 4)
        pred_scores = pred_scores[:, 1:].reshape(-1)
        pred_labels = pred_labels[:, 1:].reshape(-1)

        # TODO(synk): filter_predictions (score threshold / min-size / per-class NMS /
        # topK) produces dynamic shapes and uses torchvision NMS; no clean static-shape
        # Pallas equivalent — returning pre-NMS predictions.
        return {
            "cls_scores": cls_scores,
            "box_transform_pred": box_transform_pred,
            "boxes": pred_boxes,
            "scores": pred_scores,
            "labels": pred_labels,
        }


# --------------------------------------------------------------------------
if __name__ == "__main__":
    key = jax.random.PRNGKey(0)
    k_feat, k_prop, k_params = jax.random.split(key, 3)

    # small, self-consistent shapes
    in_channels = 4
    num_classes = 5           # incl. background
    num_proposals = 8
    H_img, W_img = 64, 64
    H_feat, W_feat = 16, 16   # spatial_scale = 0.25

    model_config = {
        "roi_batch_size": 128,
        "roi_pos_fraction": 0.25,
        "roi_iou_threshold": 0.5,
        "roi_low_bg_iou": 0.0,
        "roi_nms_threshold": 0.3,
        "roi_topk_detections": 100,
        "roi_score_threshold": 0.05,
        "roi_pool_size": 4,
        "fc_inner_dim": 32,
    }

    # feat is NCHW float32 (PyTorch convention)
    feat = jax.random.normal(k_feat, (1, in_channels, H_feat, W_feat), jnp.float32)

    # deterministic proposals [x1, y1, x2, y2] in image coordinates
    pk1, pk2 = jax.random.split(k_prop)
    xy1 = jax.random.uniform(pk1, (num_proposals, 2), jnp.float32, 0.0, 40.0)
    wh = jax.random.uniform(pk2, (num_proposals, 2), jnp.float32, 18.0, 24.0)
    proposals = jnp.concatenate(
        [xy1, jnp.minimum(xy1 + wh, jnp.array([W_img, H_img], jnp.float32))], axis=-1)

    head = ROIHeadPallas(model_config, num_classes, in_channels, k_params)
    out = head(feat, proposals, (H_img, W_img))
    jax.block_until_ready(out)

    assert out["cls_scores"].shape == (num_proposals, num_classes)
    assert out["box_transform_pred"].shape == (num_proposals, num_classes, 4)
    assert out["boxes"].shape == (num_proposals * (num_classes - 1), 4)
    assert out["scores"].shape == (num_proposals * (num_classes - 1),)
    assert out["labels"].shape == (num_proposals * (num_classes - 1),)
    assert bool(jnp.all(jnp.isfinite(out["scores"])))
    print("KERNEL_OK")
</pallas_src>

<mosaic_0001>
module attributes {stable_mosaic.version = 11 : i64} {
  func.func @_roi_head_mlp_kernel(%arg0: i32, %arg1: memref<8x128xbf16, #tpu.memory_space<vmem>>, %arg2: memref<128x128xbf16, #tpu.memory_space<vmem>>, %arg3: memref<1x128xf32, #tpu.memory_space<vmem>>, %arg4: memref<128x128xbf16, #tpu.memory_space<vmem>>, %arg5: memref<1x128xf32, #tpu.memory_space<vmem>>, %arg6: memref<128x128xbf16, #tpu.memory_space<vmem>>, %arg7: memref<1x128xf32, #tpu.memory_space<vmem>>, %arg8: memref<8x128xf32, #tpu.memory_space<vmem>>, %arg9: memref<8x128xf32, #tpu.memory_space<vmem>>) attributes {dimension_semantics = [#tpu.dimension_semantics<parallel>], iteration_bounds = array<i64: 1>, scalar_prefetch = 0 : i64, scratch_operands = 0 : i64, tpu.core_type = #tpu.core_type<tc>, window_params = [{transform_indices = @transform_0, window_bounds = array<i64: 8, 128>}, {pipeline_mode = #tpu.pipeline_mode<synchronous>, transform_indices = @transform_1, window_bounds = array<i64: 128, 128>}, {pipeline_mode = #tpu.pipeline_mode<synchronous>, transform_indices = @transform_2, window_bounds = array<i64: 1, 128>}, {pipeline_mode = #tpu.pipeline_mode<synchronous>, transform_indices = @transform_3, window_bounds = array<i64: 128, 128>}, {pipeline_mode = #tpu.pipeline_mode<synchronous>, transform_indices = @transform_4, window_bounds = array<i64: 1, 128>}, {pipeline_mode = #tpu.pipeline_mode<synchronous>, transform_indices = @transform_5, window_bounds = array<i64: 128, 128>}, {pipeline_mode = #tpu.pipeline_mode<synchronous>, transform_indices = @transform_6, window_bounds = array<i64: 1, 128>}, {transform_indices = @transform_7, window_bounds = array<i64: 8, 128>}, {transform_indices = @transform_8, window_bounds = array<i64: 8, 128>}]} {
    %c0 = arith.constant 0 : index
    %c0_0 = arith.constant 0 : index
    %0 = vector.load %arg1[%c0, %c0_0] : memref<8x128xbf16, #tpu.memory_space<vmem>>, vector<8x128xbf16>
    %c0_1 = arith.constant 0 : index
    %c0_2 = arith.constant 0 : index
    %1 = vector.load %arg2[%c0_1, %c0_2] : memref<128x128xbf16, #tpu.memory_space<vmem>>, vector<128x128xbf16>
    %cst = arith.constant dense<0.000000e+00> : vector<8x128xf32>
    %2 = tpu.matmul %0, %1, %cst {dimension_numbers = #tpu.dot_dimension_numbers<[1], [0], [0], [1], [0, 0, 1, 1], [], []>} : vector<8x128xbf16>, vector<128x128xbf16>, vector<8x128xf32> -> vector<8x128xf32>
    %c0_3 = arith.constant 0 : index
    %c0_4 = arith.constant 0 : index
    %3 = vector.load %arg3[%c0_3, %c0_4] : memref<1x128xf32, #tpu.memory_space<vmem>>, vector<1x128xf32>
    %4 = vector.broadcast %3 : vector<1x128xf32> to vector<8x128xf32>
    %5 = arith.addf %2, %4 : vector<8x128xf32>
    %cst_5 = arith.constant 0.000000e+00 : f32
    %6 = vector.broadcast %cst_5 : f32 to vector<8x128xf32>
    %7 = arith.maximumf %5, %6 : vector<8x128xf32>
    %8 = arith.truncf %7 : vector<8x128xf32> to vector<8x128xbf16>
    %c0_6 = arith.constant 0 : index
    %c0_7 = arith.constant 0 : index
    %9 = vector.load %arg4[%c0_6, %c0_7] : memref<128x128xbf16, #tpu.memory_space<vmem>>, vector<128x128xbf16>
    %cst_8 = arith.constant dense<0.000000e+00> : vector<8x128xf32>
    %10 = tpu.matmul %8, %9, %cst_8 {dimension_numbers = #tpu.dot_dimension_numbers<[1], [0], [0], [1], [0, 0, 1, 1], [], []>} : vector<8x128xbf16>, vector<128x128xbf16>, vector<8x128xf32> -> vector<8x128xf32>
    %c0_9 = arith.constant 0 : index
    %c0_10 = arith.constant 0 : index
    %11 = vector.load %arg5[%c0_9, %c0_10] : memref<1x128xf32, #tpu.memory_space<vmem>>, vector<1x128xf32>
    %12 = vector.broadcast %11 : vector<1x128xf32> to vector<8x128xf32>
    %13 = arith.addf %10, %12 : vector<8x128xf32>
    %cst_11 = arith.constant 0.000000e+00 : f32
    %14 = vector.broadcast %cst_11 : f32 to vector<8x128xf32>
    %15 = arith.maximumf %13, %14 : vector<8x128xf32>
    %16 = arith.truncf %15 : vector<8x128xf32> to vector<8x128xbf16>
    %c0_12 = arith.constant 0 : index
    %c0_13 = arith.constant 0 : index
    %17 = vector.load %arg6[%c0_12, %c0_13] : memref<128x128xbf16, #tpu.memory_space<vmem>>, vector<128x128xbf16>
    %cst_14 = arith.constant dense<0.000000e+00> : vector<8x128xf32>
    %18 = tpu.matmul %16, %17, %cst_14 {dimension_numbers = #tpu.dot_dimension_numbers<[1], [0], [0], [1], [0, 0, 1, 1], [], []>} : vector<8x128xbf16>, vector<128x128xbf16>, vector<8x128xf32> -> vector<8x128xf32>
    %c0_15 = arith.constant 0 : index
    %c0_16 = arith.constant 0 : index
    %19 = vector.load %arg7[%c0_15, %c0_16] : memref<1x128xf32, #tpu.memory_space<vmem>>, vector<1x128xf32>
    %20 = vector.broadcast %19 : vector<1x128xf32> to vector<8x128xf32>
    %21 = arith.addf %18, %20 : vector<8x128xf32>
    %c0_17 = arith.constant 0 : index
    %c0_18 = arith.constant 0 : index
    %22 = vector.load %arg8[%c0_17, %c0_18] : memref<8x128xf32, #tpu.memory_space<vmem>>, vector<8x128xf32>
    tpu.vector_store %arg8[%c0_17, %c0_18], %21 {strides = array<i32>} : memref<8x128xf32, #tpu.memory_space<vmem>>, vector<8x128xf32>,
    %23 = tpu.iota {dimensions = array<i32: 1>} : vector<8x128xi32>
    %c5_i32 = arith.constant 5 : i32
    %24 = vector.broadcast %c5_i32 : i32 to vector<8x128xi32>
    %25 = arith.cmpi slt, %23, %24 : vector<8x128xi32>
    %cst_19 = arith.constant 0xFF800000 : f32
    %26 = vector.broadcast %cst_19 : f32 to vector<8x128xf32>
    %27 = arith.select %25, %21, %26 : vector<8x128xi1>, vector<8x128xf32>
    %cst_20 = arith.constant dense<0xFF800000> : vector<8xf32>
    %28 = vector.multi_reduction <maximumf>, %27, %cst_20 [1] : vector<8x128xf32> to vector<8xf32>
    %29 = vector.shape_cast %28 : vector<8xf32> to vector<8x1xf32>
    %30 = vector.broadcast %29 : vector<8x1xf32> to vector<8x128xf32>
    %31 = arith.subf %27, %30 : vector<8x128xf32>
    %32 = math.exp %31 : vector<8x128xf32>
    %cst_21 = arith.constant dense<0.000000e+00> : vector<8xf32>
    %33 = vector.multi_reduction <add>, %32, %cst_21 [1] : vector<8x128xf32> to vector<8xf32>
    %34 = vector.shape_cast %33 : vector<8xf32> to vector<8x1xf32>
    %35 = tpu.reciprocal %34 {approx = true} : vector<8x1xf32> -> vector<8x1xf32>
    %36 = vector.broadcast %35 : vector<8x1xf32> to vector<8x128xf32>
    %37 = arith.mulf %32, %36 : vector<8x128xf32>
    %c0_22 = arith.constant 0 : index
    %c0_23 = arith.constant 0 : index
    %38 = vector.load %arg9[%c0_22, %c0_23] : memref<8x128xf32, #tpu.memory_space<vmem>>, vector<8x128xf32>
    tpu.vector_store %arg9[%c0_22, %c0_23], %37 {strides = array<i32>} : memref<8x128xf32, #tpu.memory_space<vmem>>, vector<8x128xf32>,
    return
  }
  func.func @transform_0(%arg0: i32) -> (i32, i32) {
    %c0_i32 = arith.constant 0 : i32
    %c0_i32_0 = arith.constant 0 : i32
    return %arg0, %c0_i32 : i32, i32
  }
  func.func @transform_1(%arg0: i32) -> (i32, i32) {
    %c0_i32 = arith.constant 0 : i32
    %c0_i32_0 = arith.constant 0 : i32
    %c0_i32_1 = arith.constant 0 : i32
    return %c0_i32, %c0_i32_0 : i32, i32
  }
  func.func @transform_2(%arg0: i32) -> (i32, i32) {
    %c0_i32 = arith.constant 0 : i32
    %c0_i32_0 = arith.constant 0 : i32
    %c0_i32_1 = arith.constant 0 : i32
    return %c0_i32, %c0_i32_0 : i32, i32
  }
  func.func @transform_3(%arg0: i32) -> (i32, i32) {
    %c0_i32 = arith.constant 0 : i32
    %c0_i32_0 = arith.constant 0 : i32
    %c0_i32_1 = arith.constant 0 : i32
    return %c0_i32, %c0_i32_0 : i32, i32
  }
  func.func @transform_4(%arg0: i32) -> (i32, i32) {
    %c0_i32 = arith.constant 0 : i32
    %c0_i32_0 = arith.constant 0 : i32
    %c0_i32_1 = arith.constant 0 : i32
    return %c0_i32, %c0_i32_0 : i32, i32
  }
  func.func @transform_5(%arg0: i32) -> (i32, i32) {
    %c0_i32 = arith.constant 0 : i32
    %c0_i32_0 = arith.constant 0 : i32
    %c0_i32_1 = arith.constant 0 : i32
    return %c0_i32, %c0_i32_0 : i32, i32
  }
  func.func @transform_6(%arg0: i32) -> (i32, i32) {
    %c0_i32 = arith.constant 0 : i32
    %c0_i32_0 = arith.constant 0 : i32
    %c0_i32_1 = arith.constant 0 : i32
    return %c0_i32, %c0_i32_0 : i32, i32
  }
  func.func @transform_7(%arg0: i32) -> (i32, i32) {
    %c0_i32 = arith.constant 0 : i32
    %c0_i32_0 = arith.constant 0 : i32
    return %arg0, %c0_i32 : i32, i32
  }
  func.func @transform_8(%arg0: i32) -> (i32, i32) {
    %c0_i32 = arith.constant 0 : i32
    %c0_i32_0 = arith.constant 0 : i32
    return %arg0, %c0_i32 : i32, i32
  }
}

</mosaic_0001>

<llo_original>
// kernel: tpu_custom_call.1
$region0: #{tpu_custom_call.1}
  #allocation0 [shape = 'u32[]', space=smem, size = 0x4, offset = 0x4, fixed_abs, tag = 'smem constant byte address 0x4 - core index']
  #allocation1 [shape = 'u32[144,128]{1,0:T(1,128)}', space=vmem, size = 0x12000, scoped, tag = 'internal scratch']
  %s0 = inlined_call_operand.hbm [shape: bf16[8,128], index: 0, kind: input, shape index: {}]
  %s1 = inlined_call_operand.hbm [shape: bf16[128,128], index: 1, kind: input, shape index: {}]
  %s2 = inlined_call_operand.vmem [shape: f32[1,128], index: 2, kind: input, shape index: {}]
  %s3 = inlined_call_operand.hbm [shape: bf16[128,128], index: 3, kind: input, shape index: {}]
  %s4 = inlined_call_operand.vmem [shape: f32[1,128], index: 4, kind: input, shape index: {}]
  %s5 = inlined_call_operand.hbm [shape: bf16[128,128], index: 5, kind: input, shape index: {}]
  %s6 = inlined_call_operand.vmem [shape: f32[1,128], index: 6, kind: input, shape index: {}]
  %s7 = inlined_call_operand.hbm [shape: f32[8,128], index: 7, kind: output, shape index: {0}]
  %s8 = inlined_call_operand.hbm [shape: f32[8,128], index: 8, kind: output, shape index: {1}]
  %9 = xla_tuple %s7, %s8
  %s10 = sld [smem:[#allocation0]]
  $region62: #{tpu_custom_call.1} parent=0
    _
  %s12 = ssub.s32 1, %s10
  %s13 = scalar_select 0, %s12, %s10
  $region1: #{tpu_custom_call.1} parent=0
    #allocation2 [shape = 'u8[2048]{0}', space=vmem, size = 0x800, scoped, tag = 'input window, operand 0, single buffered']
    #allocation3 [shape = 's32[1]{0}', space=sflag, size = 0x4, scoped, tag = 'scoped memory for tpu_custom_call.1']
    #allocation4 [shape = 's32[1]{0}', space=sflag, size = 0x4, scoped, tag = 'scoped memory for tpu_custom_call.1']
    #allocation5 [shape = 'u8[32768]{0}', space=vmem, size = 0x8000, scoped, tag = 'input window, operand 1, single buffered']
    #allocation6 [shape = 's32[1]{0}', space=sflag, size = 0x4, scoped, tag = 'scoped memory for tpu_custom_call.1']
    #allocation7 [shape = 'u8[32768]{0}', space=vmem, size = 0x8000, scoped, tag = 'input window, operand 3, single buffered']
    #allocation8 [shape = 'u8[32768]{0}', space=vmem, size = 0x8000, scoped, tag = 'input window, operand 5, single buffered']
    #allocation9 [shape = 's32[1]{0}', space=sflag, size = 0x4, scoped, tag = 'scoped memory for tpu_custom_call.1']
    #allocation10 [shape = 'u8[4096]{0}', space=vmem, size = 0x1000, scoped, tag = 'output window, operand 0, single buffered']
    #allocation11 [shape = 'u8[4096]{0}', space=vmem, size = 0x1000, scoped, tag = 'output window, operand 1, single buffered']
    #allocation12 [shape = 's32[1]{0}', space=sflag, size = 0x4, scoped, tag = 'scoped memory for tpu_custom_call.1']
    %14 = vsyncpa [#allocation3], 0
    %15 = vsyncpa [#allocation6], 0
    %16 = vsyncpa [#allocation9], 0
    %17 = vsyncpa [#allocation4], 0
    %18 = vsyncpa [#allocation12], 0
    // Predicated region
    $region2: #{tpu_custom_call.1} parent=1 // pred_check
      _
    $region3: #{tpu_custom_call.1} parent=1 // pred_check_branch
      %20 = sbr.rel (0) target = $region5
    $region4: #{tpu_custom_call.1} parent=1 // pred_region
      %s22 = ssub.s32 64, 64
      %23 = vsyncadd [#allocation3], %s22
      %s25 = sshll.u32 [#allocation2], 4
      %s26 = int_to_ptr.vmem [resolvable:$true] %s25
      %28 = dma.hbm_to_vmem [thread:$0]  %s0, 64, %s26, [#allocation3]
    $region5: #{tpu_custom_call.1} parent=1 // pred_fallthru
      _
    // Predicated region
    $region6: #{tpu_custom_call.1} parent=1 // pred_check
      _
    $region7: #{tpu_custom_call.1} parent=1 // pred_check_branch
      %30 = sbr.rel (0) target = $region9
    $region8: #{tpu_custom_call.1} parent=1 // pred_region
      %s32 = ssub.s32 1024, 1024
      %33 = vsyncadd [#allocation6], %s32
      %s34 = sshll.u32 [#allocation5], 4
      %s35 = int_to_ptr.vmem [resolvable:$true] %s34
      %40 = dma.hbm_to_vmem [thread:$0]  %s1, 1024, %s35, [#allocation6], 64, 64, 4
    $region9: #{tpu_custom_call.1} parent=1 // pred_fallthru
      _
    // Predicated region
    $region10: #{tpu_custom_call.1} parent=1 // pred_check
      _
    $region11: #{tpu_custom_call.1} parent=1 // pred_check_branch
      %42 = sbr.rel (0) target = $region13
    $region12: #{tpu_custom_call.1} parent=1 // pred_region
      _
    $region13: #{tpu_custom_call.1} parent=1 // pred_fallthru
      _
    // Predicated region
    $region14: #{tpu_custom_call.1} parent=1 // pred_check
      _
    $region15: #{tpu_custom_call.1} parent=1 // pred_check_branch
      %44 = sbr.rel (0) target = $region17
    $region16: #{tpu_custom_call.1} parent=1 // pred_region
      %s46 = ssub.s32 1024, 1024
      %47 = vsyncadd [#allocation6], %s46
      %s48 = sshll.u32 [#allocation7], 4
      %s49 = int_to_ptr.vmem [resolvable:$true] %s48
      %54 = dma.hbm_to_vmem [thread:$0]  %s3, 1024, %s49, [#allocation6], 64, 64, 4
    $region17: #{tpu_custom_call.1} parent=1 // pred_fallthru
      _
    // Predicated region
    $region18: #{tpu_custom_call.1} parent=1 // pred_check
      _
    $region19: #{tpu_custom_call.1} parent=1 // pred_check_branch
      %56 = sbr.rel (0) target = $region21
    $region20: #{tpu_custom_call.1} parent=1 // pred_region
      _
    $region21: #{tpu_custom_call.1} parent=1 // pred_fallthru
      _
    // Predicated region
    $region22: #{tpu_custom_call.1} parent=1 // pred_check
      _
    $region23: #{tpu_custom_call.1} parent=1 // pred_check_branch
      %58 = sbr.rel (0) target = $region25
    $region24: #{tpu_custom_call.1} parent=1 // pred_region
      %s60 = ssub.s32 1024, 1024
      %61 = vsyncadd [#allocation9], %s60
      %s62 = sshll.u32 [#allocation8], 4
      %s63 = int_to_ptr.vmem [resolvable:$true] %s62
      %68 = dma.hbm_to_vmem [thread:$0]  %s5, 1024, %s63, [#allocation9], 64, 64, 4
    $region25: #{tpu_custom_call.1} parent=1 // pred_fallthru
      _
    // Predicated region
    $region26: #{tpu_custom_call.1} parent=1 // pred_check
      _
    $region27: #{tpu_custom_call.1} parent=1 // pred_check_branch
      %70 = sbr.rel (0) target = $region29
    $region28: #{tpu_custom_call.1} parent=1 // pred_region
      _
    $region29: #{tpu_custom_call.1} parent=1 // pred_fallthru
      _
    // Predicated region
    $region30: #{tpu_custom_call.1} parent=1 // pred_check
      _
    $region31: #{tpu_custom_call.1} parent=1 // pred_check_branch
      %72 = sbr.rel (0) target = $region33
    $region32: #{tpu_custom_call.1} parent=1 // pred_region
      %73 = dma.done [#allocation3], 64
    $region33: #{tpu_custom_call.1} parent=1 // pred_fallthru
      _
    // Predicated region
    $region34: #{tpu_custom_call.1} parent=1 // pred_check
      _
    $region35: #{tpu_custom_call.1} parent=1 // pred_check_branch
      %75 = sbr.rel (0) target = $region37
    $region36: #{tpu_custom_call.1} parent=1 // pred_region
      %76 = dma.done [#allocation6], 1024
    $region37: #{tpu_custom_call.1} parent=1 // pred_fallthru
      _
    // Predicated region
    $region38: #{tpu_custom_call.1} parent=1 // pred_check
      _
    $region39: #{tpu_custom_call.1} parent=1 // pred_check_branch
      %78 = sbr.rel (0) target = $region41
    $region40: #{tpu_custom_call.1} parent=1 // pred_region
      %79 = dma.done [#allocation6], 1024
    $region41: #{tpu_custom_call.1} parent=1 // pred_fallthru
      _
    // Predicated region
    $region42: #{tpu_custom_call.1} parent=1 // pred_check
      _
    $region43: #{tpu_custom_call.1} parent=1 // pred_check_branch
      %81 = sbr.rel (0) target = $region45
    $region44: #{tpu_custom_call.1} parent=1 // pred_region
      %82 = dma.done [#allocation9], 1024
    $region45: #{tpu_custom_call.1} parent=1 // pred_fallthru
      _
    %v84 = vld [vmem:[#allocation2] sm:$0xf]
    %v85 = vld [vmem:[#allocation5] sm:$0xf]
    %v86 = vld [vmem:[#allocation5 + $0x4] sm:$0xf]
    %v87 = vld [vmem:[#allocation5 + $0x8] sm:$0xf]
    %v88 = vld [vmem:[#allocation5 + $0xc] sm:$0xf]
    %v89 = vld [vmem:[#allocation5 + $0x10] sm:$0xf]
    %v90 = vld [vmem:[#allocation5 + $0x14] sm:$0xf]
    %v91 = vld [vmem:[#allocation5 + $0x18] sm:$0xf]
    %v92 = vld [vmem:[#allocation5 + $0x1c] sm:$0xf]
    %v93 = vld [vmem:[#allocation5 + $0x20] sm:$0xf]
    %v94 = vld [vmem:[#allocation5 + $0x24] sm:$0xf]
    %v95 = vld [vmem:[#allocation5 + $0x28] sm:$0xf]
    %v96 = vld [vmem:[#allocation5 + $0x2c] sm:$0xf]
    %v97 = vld [vmem:[#allocation5 + $0x30] sm:$0xf]
    %v98 = vld [vmem:[#allocation5 + $0x34] sm:$0xf]
    %v99 = vld [vmem:[#allocation5 + $0x38] sm:$0xf]
    %v100 = vld [vmem:[#allocation5 + $0x3c] sm:$0xf]
    %v101 = vld [vmem:[%s2] sm:$0x1]
    %v103 = vlaneseq
    %v104 = vshrl.u32 %v103, 7
    %v105 = vsub.s32 0, %v104
    %v106 = vrot.slane %v101, %v105
    %v124 = vunpack.c.l.b16 %v85
    %v125 = vunpack.c.l.b16 %v86
    %v126 = vunpack.c.l.b16 %v87
    %v127 = vunpack.c.l.b16 %v88
    %v128 = vunpack.c.l.b16 %v89
    %v129 = vunpack.c.l.b16 %v90
    %v130 = vunpack.c.l.b16 %v91
    %v131 = vunpack.c.l.b16 %v92
    %v132 = vunpack.c.l.b16 %v93
    %v133 = vunpack.c.l.b16 %v94
    %v134 = vunpack.c.l.b16 %v95
    %v135 = vunpack.c.l.b16 %v96
    %v136 = vunpack.c.l.b16 %v97
    %v137 = vunpack.c.l.b16 %v98
    %v138 = vunpack.c.l.b16 %v99
    %v139 = vunpack.c.l.b16 %v100
    %v140 = vpack.c.b16 %v125, %v124
    %v141 = vpack.c.b16 %v127, %v126
    %v142 = vpack.c.b16 %v129, %v128
    %v143 = vpack.c.b16 %v131, %v130
    %v144 = vpack.c.b16 %v133, %v132
    %v145 = vpack.c.b16 %v135, %v134
    %v146 = vpack.c.b16 %v137, %v136
    %v147 = vpack.c.b16 %v139, %v138
    %156 = vmatprep.subr.bf16.mxu0 0
    %157 = vmatpush1.bf16.msra.mxu0 %v140
    %158 = vmatprep.subr.bf16.mxu0 0
    %159 = vmatpush1.bf16.msra.mxu0 %v141
    %160 = vmatprep.subr.bf16.mxu0 0
    %161 = vmatpush1.bf16.msra.mxu0 %v142
    %162 = vmatprep.subr.bf16.mxu0 0
    %163 = vmatpush1.bf16.msra.mxu0 %v143
    %164 = vmatprep.subr.bf16.mxu0 0
    %165 = vmatpush1.bf16.msra.mxu0 %v144
    %166 = vmatprep.subr.bf16.mxu0 0
    %167 = vmatpush1.bf16.msra.mxu0 %v145
    %168 = vmatprep.subr.bf16.mxu0 0
    %169 = vmatpush1.bf16.msra.mxu0 %v146
    %170 = vmatprep.subr.bf16.mxu0 0
    %171 = vmatpush1.bf16.msra.mxu0 %v147
    %172 = vmatprep.subr.bf16.mxu0 0
    %173 = vmatpush1.bf16.msra.mxu0 0
    %174 = vmatprep.subr.bf16.mxu0 0
    %175 = vmatpush1.bf16.msra.mxu0 0
    %176 = vmatprep.subr.bf16.mxu0 0
    %177 = vmatpush1.bf16.msra.mxu0 0
    %178 = vmatprep.subr.bf16.mxu0 0
    %179 = vmatpush1.bf16.msra.mxu0 0
    %180 = vmatprep.subr.bf16.mxu0 0
    %181 = vmatpush1.bf16.msra.mxu0 0
    %182 = vmatprep.subr.bf16.mxu0 0
    %183 = vmatpush1.bf16.msra.mxu0 0
    %184 = vmatprep.subr.bf16.mxu0 0
    %185 = vmatpush1.bf16.msra.mxu0 0
    %186 = vmatprep.subr.bf16.mxu0 0
    %187 = vmatpush1.bf16.msra.mxu0 0
    %188 = vmatprep.mubr.bf16.mxu0 0
    %189 = vmatmul.mubr.bf16.gmra.mrb[0].mxu0 %v84
    %v190 = vpop.f32.mrb[0].mxu0
    %v191 = vadd.f32 %v106, %v190
    %v192 = vpop.f32.mrb[0].mxu0
    %v193 = vpop.f32.mrb[0].mxu0
    %v194 = vpop.f32.mrb[0].mxu0
    %195 = vdwg.mxu0
    %v196 = vmax.f32 %v191, 0.0
    %v197 = vpack.c.bf16 %v196, %v196
    %v198 = vld [vmem:[#allocation7] sm:$0xf]
    %v199 = vld [vmem:[#allocation7 + $0x4] sm:$0xf]
    %v200 = vld [vmem:[#allocation7 + $0x8] sm:$0xf]
    %v201 = vld [vmem:[#allocation7 + $0xc] sm:$0xf]
    %v202 = vld [vmem:[#allocation7 + $0x10] sm:$0xf]
    %v203 = vld [vmem:[#allocation7 + $0x14] sm:$0xf]
    %v204 = vld [vmem:[#allocation7 + $0x18] sm:$0xf]
    %v205 = vld [vmem:[#allocation7 + $0x1c] sm:$0xf]
    %v206 = vld [vmem:[#allocation7 + $0x20] sm:$0xf]
    %v207 = vld [vmem:[#allocation7 + $0x24] sm:$0xf]
    %v208 = vld [vmem:[#allocation7 + $0x28] sm:$0xf]
    %v209 = vld [vmem:[#allocation7 + $0x2c] sm:$0xf]
    %v210 = vld [vmem:[#allocation7 + $0x30] sm:$0xf]
    %v211 = vld [vmem:[#allocation7 + $0x34] sm:$0xf]
    %v212 = vld [vmem:[#allocation7 + $0x38] sm:$0xf]
    %v213 = vld [vmem:[#allocation7 + $0x3c] sm:$0xf]
    %v214 = vld [vmem:[%s4] sm:$0x1]
    %v216 = vlaneseq
    %v217 = vshrl.u32 %v216, 7
    %v218 = vsub.s32 0, %v217
    %v219 = vrot.slane %v214, %v218
    %v237 = vunpack.c.l.b16 %v198
    %v238 = vunpack.c.l.b16 %v199
    %v239 = vunpack.c.l.b16 %v200
    %v240 = vunpack.c.l.b16 %v201
    %v241 = vunpack.c.l.b16 %v202
    %v242 = vunpack.c.l.b16 %v203
    %v243 = vunpack.c.l.b16 %v204
    %v244 = vunpack.c.l.b16 %v205
    %v245 = vunpack.c.l.b16 %v206
    %v246 = vunpack.c.l.b16 %v207
    %v247 = vunpack.c.l.b16 %v208
    %v248 = vunpack.c.l.b16 %v209
    %v249 = vunpack.c.l.b16 %v210
    %v250 = vunpack.c.l.b16 %v211
    %v251 = vunpack.c.l.b16 %v212
    %v252 = vunpack.c.l.b16 %v213
    %v253 = vpack.c.b16 %v238, %v237
    %v254 = vpack.c.b16 %v240, %v239
    %v255 = vpack.c.b16 %v242, %v241
    %v256 = vpack.c.b16 %v244, %v243
    %v257 = vpack.c.b16 %v246, %v245
    %v258 = vpack.c.b16 %v248, %v247
    %v259 = vpack.c.b16 %v250, %v249
    %v260 = vpack.c.b16 %v252, %v251
    %269 = vmatprep.subr.bf16.mxu0 0
    %270 = vmatpush1.bf16.msra.mxu0 %v253
    %271 = vmatprep.subr.bf16.mxu0 0
    %272 = vmatpush1.bf16.msra.mxu0 %v254
    %273 = vmatprep.subr.bf16.mxu0 0
    %274 = vmatpush1.bf16.msra.mxu0 %v255
    %275 = vmatprep.subr.bf16.mxu0 0
    %276 = vmatpush1.bf16.msra.mxu0 %v256
    %277 = vmatprep.subr.bf16.mxu0 0
    %278 = vmatpush1.bf16.msra.mxu0 %v257
    %279 = vmatprep.subr.bf16.mxu0 0
    %280 = vmatpush1.bf16.msra.mxu0 %v258
    %281 = vmatprep.subr.bf16.mxu0 0
    %282 = vmatpush1.bf16.msra.mxu0 %v259
    %283 = vmatprep.subr.bf16.mxu0 0
    %284 = vmatpush1.bf16.msra.mxu0 %v260
    %285 = vmatprep.subr.bf16.mxu0 0
    %286 = vmatpush1.bf16.msra.mxu0 0
    %287 = vmatprep.subr.bf16.mxu0 0
    %288 = vmatpush1.bf16.msra.mxu0 0
    %289 = vmatprep.subr.bf16.mxu0 0
    %290 = vmatpush1.bf16.msra.mxu0 0
    %291 = vmatprep.subr.bf16.mxu0 0
    %292 = vmatpush1.bf16.msra.mxu0 0
    %293 = vmatprep.subr.bf16.mxu0 0
    %294 = vmatpush1.bf16.msra.mxu0 0
    %295 = vmatprep.subr.bf16.mxu0 0
    %296 = vmatpush1.bf16.msra.mxu0 0
    %297 = vmatprep.subr.bf16.mxu0 0
    %298 = vmatpush1.bf16.msra.mxu0 0
    %299 = vmatprep.subr.bf16.mxu0 0
    %300 = vmatpush1.bf16.msra.mxu0 0
    %301 = vmatprep.mubr.bf16.mxu0 0
    %302 = vmatmul.mubr.bf16.gmra.mrb[0].mxu0 %v197
    %v303 = vpop.f32.mrb[0].mxu0
    %v304 = vadd.f32 %v219, %v303
    %v305 = vpop.f32.mrb[0].mxu0
    %v306 = vpop.f32.mrb[0].mxu0
    %v307 = vpop.f32.mrb[0].mxu0
    %308 = vdwg.mxu0
    %v309 = vmax.f32 %v304, 0.0
    %v310 = vpack.c.bf16 %v309, %v309
    %v311 = vld [vmem:[#allocation8] sm:$0xf]
    %v312 = vld [vmem:[#allocation8 + $0x4] sm:$0xf]
    %v313 = vld [vmem:[#allocation8 + $0x8] sm:$0xf]
    %v314 = vld [vmem:[#allocation8 + $0xc] sm:$0xf]
    %v315 = vld [vmem:[#allocation8 + $0x10] sm:$0xf]
    %v316 = vld [vmem:[#allocation8 + $0x14] sm:$0xf]
    %v317 = vld [vmem:[#allocation8 + $0x18] sm:$0xf]
    %v318 = vld [vmem:[#allocation8 + $0x1c] sm:$0xf]
    %v319 = vld [vmem:[#allocation8 + $0x20] sm:$0xf]
    %v320 = vld [vmem:[#allocation8 + $0x24] sm:$0xf]
    %v321 = vld [vmem:[#allocation8 + $0x28] sm:$0xf]
    %v322 = vld [vmem:[#allocation8 + $0x2c] sm:$0xf]
    %v323 = vld [vmem:[#allocation8 + $0x30] sm:$0xf]
    %v324 = vld [vmem:[#allocation8 + $0x34] sm:$0xf]
    %v325 = vld [vmem:[#allocation8 + $0x38] sm:$0xf]
    %v326 = vld [vmem:[#allocation8 + $0x3c] sm:$0xf]
    %v327 = vld [vmem:[%s6] sm:$0x1]
    %v329 = vlaneseq
    %v330 = vshrl.u32 %v329, 7
    %v331 = vsub.s32 0, %v330
    %v332 = vrot.slane %v327, %v331
    %v350 = vunpack.c.l.b16 %v311
    %v351 = vunpack.c.l.b16 %v312
    %v352 = vunpack.c.l.b16 %v313
    %v353 = vunpack.c.l.b16 %v314
    %v354 = vunpack.c.l.b16 %v315
    %v355 = vunpack.c.l.b16 %v316
    %v356 = vunpack.c.l.b16 %v317
    %v357 = vunpack.c.l.b16 %v318
    %v358 = vunpack.c.l.b16 %v319
    %v359 = vunpack.c.l.b16 %v320
    %v360 = vunpack.c.l.b16 %v321
    %v361 = vunpack.c.l.b16 %v322
    %v362 = vunpack.c.l.b16 %v323
    %v363 = vunpack.c.l.b16 %v324
    %v364 = vunpack.c.l.b16 %v325
    %v365 = vunpack.c.l.b16 %v326
    %v366 = vpack.c.b16 %v351, %v350
    %v367 = vpack.c.b16 %v353, %v352
    %v368 = vpack.c.b16 %v355, %v354
    %v369 = vpack.c.b16 %v357, %v356
    %v370 = vpack.c.b16 %v359, %v358
    %v371 = vpack.c.b16 %v361, %v360
    %v372 = vpack.c.b16 %v363, %v362
    %v373 = vpack.c.b16 %v365, %v364
    %382 = vmatprep.subr.bf16.mxu0 0
    %383 = vmatpush1.bf16.msra.mxu0 %v366
    %384 = vmatprep.subr.bf16.mxu0 0
    %385 = vmatpush1.bf16.msra.mxu0 %v367
    %386 = vmatprep.subr.bf16.mxu0 0
    %387 = vmatpush1.bf16.msra.mxu0 %v368
    %388 = vmatprep.subr.bf16.mxu0 0
    %389 = vmatpush1.bf16.msra.mxu0 %v369
    %390 = vmatprep.subr.bf16.mxu0 0
    %391 = vmatpush1.bf16.msra.mxu0 %v370
    %392 = vmatprep.subr.bf16.mxu0 0
    %393 = vmatpush1.bf16.msra.mxu0 %v371
    %394 = vmatprep.subr.bf16.mxu0 0
    %395 = vmatpush1.bf16.msra.mxu0 %v372
    %396 = vmatprep.subr.bf16.mxu0 0
    %397 = vmatpush1.bf16.msra.mxu0 %v373
    %398 = vmatprep.subr.bf16.mxu0 0
    %399 = vmatpush1.bf16.msra.mxu0 0
    %400 = vmatprep.subr.bf16.mxu0 0
    %401 = vmatpush1.bf16.msra.mxu0 0
    %402 = vmatprep.subr.bf16.mxu0 0
    %403 = vmatpush1.bf16.msra.mxu0 0
    %404 = vmatprep.subr.bf16.mxu0 0
    %405 = vmatpush1.bf16.msra.mxu0 0
    %406 = vmatprep.subr.bf16.mxu0 0
    %407 = vmatpush1.bf16.msra.mxu0 0
    %408 = vmatprep.subr.bf16.mxu0 0
    %409 = vmatpush1.bf16.msra.mxu0 0
    %410 = vmatprep.subr.bf16.mxu0 0
    %411 = vmatpush1.bf16.msra.mxu0 0
    %412 = vmatprep.subr.bf16.mxu0 0
    %413 = vmatpush1.bf16.msra.mxu0 0
    %414 = vmatprep.mubr.bf16.mxu0 0
    %415 = vmatmul.mubr.bf16.gmra.mrb[0].mxu0 %v310
    %v416 = vpop.f32.mrb[0].mxu0
    %v417 = vadd.f32 %v332, %v416
    %v418 = vpop.f32.mrb[0].mxu0
    %v419 = vpop.f32.mrb[0].mxu0
    %v420 = vpop.f32.mrb[0].mxu0
    %421 = vdwg.mxu0
    %422 = vst [vmem:[#allocation10] sm:$0xff] %v417
    %v423 = vlaneseq
    %v424 = vand.u32 %v423, 127
    %vm425 = vcmp.lt.s32.totalorder %v424, 5
    %v426 = vsel %vm425, %v417, -inf
    %427 = vmax.xlane.f32.xlu0 %v426
    %v428 = vpop.xlane.xlu0 %427
    %v429 = vsub.f32 %v426, %v428
    %v430 = vmul.f32 %v429, 1.442695
    %v431 = vpow.pop %v430
    %432 = vadd.xlane.f32.xlu0 %v431
    %v433 = vpop.xlane.xlu0 %432
    %v434 = vrcp.pop %v433
    %v435 = vmul.f32 %v431, %v434
    %436 = vst [vmem:[#allocation11] sm:$0xff] %v435
    // Predicated region
    $region46: #{tpu_custom_call.1} parent=1 // pred_check
      _
    $region47: #{tpu_custom_call.1} parent=1 // pred_check_branch
      %438 = sbr.rel (0) target = $region49
    $region48: #{tpu_custom_call.1} parent=1 // pred_region
      %s440 = ssub.s32 128, 128
      %441 = vsyncadd [#allocation4], %s440
      %s443 = sshll.u32 [#allocation10], 4
      %s444 = int_to_ptr.vmem [resolvable:$true] %s443
      %446 = dma.vmem_to_hbm [thread:$0]  %s444, 128, %s7, [#allocation4]
    $region49: #{tpu_custom_call.1} parent=1 // pred_fallthru
      _
    // Predicated region
    $region50: #{tpu_custom_call.1} parent=1 // pred_check
      _
    $region51: #{tpu_custom_call.1} parent=1 // pred_check_branch
      %448 = sbr.rel (0) target = $region53
    $region52: #{tpu_custom_call.1} parent=1 // pred_region
      %s450 = ssub.s32 128, 128
      %451 = vsyncadd [#allocation12], %s450
      %s453 = sshll.u32 [#allocation11], 4
      %s454 = int_to_ptr.vmem [resolvable:$true] %s453
      %456 = dma.vmem_to_hbm [thread:$0]  %s454, 128, %s8, [#allocation12]
    $region53: #{tpu_custom_call.1} parent=1 // pred_fallthru
      _
    // Predicated region
    $region54: #{tpu_custom_call.1} parent=1 // pred_check
      _
    $region55: #{tpu_custom_call.1} parent=1 // pred_check_branch
      %458 = sbr.rel (0) target = $region57
    $region56: #{tpu_custom_call.1} parent=1 // pred_region
      %459 = dma.done [#allocation4], 128
    $region57: #{tpu_custom_call.1} parent=1 // pred_fallthru
      _
    // Predicated region
    $region58: #{tpu_custom_call.1} parent=1 // pred_check
      _
    $region59: #{tpu_custom_call.1} parent=1 // pred_check_branch
      %461 = sbr.rel (0) target = $region61
    $region60: #{tpu_custom_call.1} parent=1 // pred_region
      %462 = dma.done [#allocation12], 128
    $region61: #{tpu_custom_call.1} parent=1 // pred_fallthru
      _
    %463 = vsyncpa [#allocation3], 1
    %464 = vsyncpa [#allocation6], 1
    %465 = vsyncpa [#allocation9], 1
    %466 = vsyncpa [#allocation4], 1
    %467 = vsyncpa [#allocation12], 1

</llo_original>
